<compile_context>
chip_gen: v6e
topology: v6e:2x2x1
jax: 0.10.0
libtpu: 0.0.40
codegen_flags: <defaults>
</compile_context>

<pallas_src>
import math

import jax
import jax.numpy as jnp
from jax.experimental import pallas as pl
from jax.experimental.pallas import tpu as pltpu

_LOG_2PI = math.log(2.0 * math.pi)


def _sum_sq_kernel(y_ref, m_ref, c_ref, out_ref):
    """Accumulates this shard's sum over batch rows of ||y @ M - c||^2 into the
    shard's (8, De) output block (sublane partials; final reduce in wrapper)."""
    @pl.when(pl.program_id(1) == 0)
    def _init():
        out_ref[...] = jnp.zeros_like(out_ref)

    # inverse(y) = y @ M - c  (c = b @ M precomputed in the wrapper), MXU, f32 acc.
    x = jnp.dot(y_ref[...], m_ref[...], preferred_element_type=jnp.float32) - c_ref[...]
    sq = x * x                                   # (tb, De)
    tb, De = sq.shape
    # Pure-VPU vreg accumulation into the resident (8, De) output block; the
    # cross-lane/sublane reduction happens once, in the wrapper.
    out_ref[...] += jnp.sum(sq.reshape(tb // 8, 8, De), axis=0)


def normalized_flow_loss(y, b, M, *, tb=None, num_shards=2, y_tile_bytes=2 << 20):
    """Returns (total_loss, mean_neg_log_prob, mean_neg_log_det) like the torch module."""
    B, D = y.shape
    y = y.astype(jnp.float32)
    M = M.astype(jnp.float32)

    # Fold the bias:  (y - b) @ M == y @ M - (b @ M).
    c = (b.reshape(1, D) @ M).astype(jnp.float32)                 # (1, D)

    # ---- lane folding: pack f samples per 128-lane row when D < 128 ----------
    f = 128 // D if (D < 128 and 128 % D == 0) else 1
    De = f * D
    if f > 1:
        M_k = jnp.kron(jnp.eye(f, dtype=jnp.float32), M)          # block_diag(M, ..., M)
        c_k = jnp.tile(c, (1, f))                                  # (1, De)
    else:
        M_k, c_k = M, c

    # ---- batch tiling in folded rows -----------------------------------------
    Bf = -(-B // f)                            # folded rows covering the batch
    if Bf < num_shards * 8:
        num_shards = 1                         # batch too small to shard
    per_shard = -(-Bf // num_shards)

    if tb is None:
        tb = (y_tile_bytes // (De * 4)) // 8 * 8       # ~y_tile_bytes per y block
    tb = max(8, -(-tb // 8) * 8)
    # Keep 2x(y tile) + 2x(resident M) + misc within ~48 MiB (fits v7x VMEM).
    fixed_bytes = 2 * De * De * 4 + 2 * De * 4 + 2 * 8 * De * 4 + (2 << 20)
    if (48 << 20) > fixed_bytes:
        tb = min(tb, max(8, (((48 << 20) - fixed_bytes) // (2 * De * 4)) // 8 * 8))
    tb = min(tb, -(-per_shard // 8) * 8)       # don't over-pad tiny batches
    tb = max(tb, 8)

    steps = -(-per_shard // tb)
    Bf_pad = num_shards * steps * tb
    B_pad = Bf_pad * f
    n_pad = B_pad - B                          # zero-padded samples (corrected below)

    y_pad = y if n_pad == 0 else jnp.concatenate(
        [y, jnp.zeros((n_pad, D), jnp.float32)], axis=0)
    y_fold = y_pad.reshape(Bf_pad, De)

    needed = 2 * tb * De * 4 + fixed_bytes
    vmem_limit = int(min(max(needed, 32 << 20), 56 << 20))

    partials = pl.pallas_call(
        _sum_sq_kernel,
        out_shape=jax.ShapeDtypeStruct((num_shards * 8, De), jnp.float32),
        grid_spec=pltpu.PrefetchScalarGridSpec(
            num_scalar_prefetch=0,
            grid=(num_shards, steps),
            in_specs=[
                pl.BlockSpec((tb, De), lambda s, i: (s * steps + i, 0)),  # y (streamed)
                pl.BlockSpec((De, De), lambda s, i: (0, 0)),              # M (resident)
                pl.BlockSpec((1, De), lambda s, i: (0, 0)),               # c = b @ M
            ],
            out_specs=pl.BlockSpec((8, De), lambda s, i: (s, 0)),         # per-shard accumulator
        ),
        compiler_params=pltpu.CompilerParams(
            # Outer axis shards the batch across TensorCores (v7x); inner axis
            # carries the resident output accumulator.
            dimension_semantics=("parallel", "arbitrary"),
            vmem_limit_bytes=vmem_limit,
        ),
    )(y_fold, M_k, c_k)

    # Remove the exact contribution of the zero-padded samples: ||0 @ M - c||^2.
    sum_sq = jnp.sum(partials) - n_pad * jnp.sum(c * c)

    # Hoisted O(D) work: log|det d inverse / dy| = sum(log(diag(M))).
    log_det = jnp.sum(jnp.log(jnp.diag(M)))

    mean_neg_log_prob = 0.5 * sum_sq / B + 0.5 * D * _LOG_2PI
    mean_neg_log_det = -log_det                # constant per sample -> mean == itself
    total = mean_neg_log_prob + mean_neg_log_det
    return total, mean_neg_log_prob, mean_neg_log_det


if __name__ == "__main__":
    import numpy as np

    def reference(y, b, M):
        D = y.shape[1]
        x = (y - b) @ M
        log_prob = -0.5 * jnp.sum(x * x, axis=-1) - 0.5 * D * _LOG_2PI
        log_det = jnp.sum(jnp.log(jnp.diag(M)))
        return ((-log_prob - log_det).mean(), (-log_prob).mean(), -log_det)

    D = 32  # input_dim

    k_w, k_d, k_b = jax.random.split(jax.random.PRNGKey(0), 3)
    # Deterministic "ReversibleLayer" parameters: upper-triangular M, positive diag.
    A = 0.1 * jax.random.normal(k_w, (D, D), jnp.float32)
    diag = jnp.exp(0.2 * jax.random.normal(k_d, (D,), jnp.float32))
    M = jnp.triu(A, 1) + jnp.diag(diag)
    b = 0.1 * jax.random.normal(k_b, (1, D), jnp.float32)

    # Case 1: small, even batch (single shard, single grid step).
    y1 = jax.random.normal(jax.random.PRNGKey(1), (16, D), jnp.float32)
    out1 = jax.block_until_ready(normalized_flow_loss(y1, b, M))
    ref1 = reference(y1, b, M)

    # Case 2: ragged batch, forced small tile -> exercises 2-shard "parallel"
    # axis, multi-step accumulation and the zero-pad correction.
    y2 = jax.random.normal(jax.random.PRNGKey(2), (200, D), jnp.float32)
    out2 = jax.block_until_ready(normalized_flow_loss(y2, b, M, tb=8))
    ref2 = reference(y2, b, M)

    for got, ref in ((out1, ref1), (out2, ref2)):
        for g, r in zip(got, ref):
            np.testing.assert_allclose(np.array(g), np.array(r), rtol=1e-5, atol=1e-5)

    print("KERNEL_OK")
</pallas_src>

<mosaic_0001>
module attributes {stable_mosaic.version = 11 : i64} {
  func.func @_sum_sq_kernel(%arg0: i32, %arg1: i32, %arg2: memref<8x128xf32, #tpu.memory_space<vmem>>, %arg3: memref<128x128xf32, #tpu.memory_space<vmem>>, %arg4: memref<1x128xf32, #tpu.memory_space<vmem>>, %arg5: memref<8x128xf32, #tpu.memory_space<vmem>>) attributes {dimension_semantics = [#tpu.dimension_semantics<parallel>, #tpu.dimension_semantics<arbitrary>], iteration_bounds = array<i64: 1, 1>, scalar_prefetch = 0 : i64, scratch_operands = 0 : i64, tpu.core_type = #tpu.core_type<tc>, window_params = [{transform_indices = @transform_0, window_bounds = array<i64: 8, 128>}, {pipeline_mode = #tpu.pipeline_mode<synchronous>, transform_indices = @transform_1, window_bounds = array<i64: 128, 128>}, {pipeline_mode = #tpu.pipeline_mode<synchronous>, transform_indices = @transform_2, window_bounds = array<i64: 1, 128>}, {transform_indices = @transform_3, window_bounds = array<i64: 8, 128>}]} {
    %c0_i32 = arith.constant 0 : i32
    %0 = arith.cmpi eq, %arg1, %c0_i32 : i32
    %1 = arith.extui %0 : i1 to i32
    %c0_i32_0 = arith.constant 0 : i32
    %2 = arith.cmpi ne, %1, %c0_i32_0 : i32
    scf.if %2 {
      %cst_11 = arith.constant 0.000000e+00 : f32
      %15 = vector.broadcast %cst_11 : f32 to vector<8x128xf32>
      %c0_12 = arith.constant 0 : index
      %c0_13 = arith.constant 0 : index
      %16 = vector.load %arg5[%c0_12, %c0_13] : memref<8x128xf32, #tpu.memory_space<vmem>>, vector<8x128xf32>
      tpu.vector_store %arg5[%c0_12, %c0_13], %15 {strides = array<i32>} : memref<8x128xf32, #tpu.memory_space<vmem>>, vector<8x128xf32>,
    } else {
    }
    %c0 = arith.constant 0 : index
    %c0_1 = arith.constant 0 : index
    %3 = vector.load %arg2[%c0, %c0_1] : memref<8x128xf32, #tpu.memory_space<vmem>>, vector<8x128xf32>
    %c0_2 = arith.constant 0 : index
    %c0_3 = arith.constant 0 : index
    %4 = vector.load %arg3[%c0_2, %c0_3] : memref<128x128xf32, #tpu.memory_space<vmem>>, vector<128x128xf32>
    %cst = arith.constant dense<0.000000e+00> : vector<8x128xf32>
    %5 = tpu.matmul %3, %4, %cst {dimension_numbers = #tpu.dot_dimension_numbers<[1], [0], [0], [1], [0, 0, 1, 1], [], []>} : vector<8x128xf32>, vector<128x128xf32>, vector<8x128xf32> -> vector<8x128xf32>
    %c0_4 = arith.constant 0 : index
    %c0_5 = arith.constant 0 : index
    %6 = vector.load %arg4[%c0_4, %c0_5] : memref<1x128xf32, #tpu.memory_space<vmem>>, vector<1x128xf32>
    %7 = vector.broadcast %6 : vector<1x128xf32> to vector<8x128xf32>
    %8 = arith.subf %5, %7 : vector<8x128xf32>
    %9 = arith.mulf %8, %8 : vector<8x128xf32>
    %c0_6 = arith.constant 0 : index
    %c0_7 = arith.constant 0 : index
    %10 = vector.load %arg5[%c0_6, %c0_7] : memref<8x128xf32, #tpu.memory_space<vmem>>, vector<8x128xf32>
    %11 = vector.shape_cast %9 : vector<8x128xf32> to vector<1x8x128xf32>
    %cst_8 = arith.constant dense<0.000000e+00> : vector<8x128xf32>
    %12 = vector.multi_reduction <add>, %11, %cst_8 [0] : vector<1x8x128xf32> to vector<8x128xf32>
    %13 = arith.addf %10, %12 : vector<8x128xf32>
    %c0_9 = arith.constant 0 : index
    %c0_10 = arith.constant 0 : index
    %14 = vector.load %arg5[%c0_9, %c0_10] : memref<8x128xf32, #tpu.memory_space<vmem>>, vector<8x128xf32>
    tpu.vector_store %arg5[%c0_9, %c0_10], %13 {strides = array<i32>} : memref<8x128xf32, #tpu.memory_space<vmem>>, vector<8x128xf32>,
    return
  }
  func.func @transform_0(%arg0: i32, %arg1: i32) -> (i32, i32) {
    %c1_i32 = arith.constant 1 : i32
    %0 = arith.muli %arg0, %c1_i32 : i32
    %1 = arith.addi %0, %arg1 : i32
    %c0_i32 = arith.constant 0 : i32
    %c0_i32_0 = arith.constant 0 : i32
    return %1, %c0_i32 : i32, i32
  }
  func.func @transform_1(%arg0: i32, %arg1: i32) -> (i32, i32) {
    %c0_i32 = arith.constant 0 : i32
    %c0_i32_0 = arith.constant 0 : i32
    %c0_i32_1 = arith.constant 0 : i32
    return %c0_i32, %c0_i32_0 : i32, i32
  }
  func.func @transform_2(%arg0: i32, %arg1: i32) -> (i32, i32) {
    %c0_i32 = arith.constant 0 : i32
    %c0_i32_0 = arith.constant 0 : i32
    %c0_i32_1 = arith.constant 0 : i32
    return %c0_i32, %c0_i32_0 : i32, i32
  }
  func.func @transform_3(%arg0: i32, %arg1: i32) -> (i32, i32) {
    %c0_i32 = arith.constant 0 : i32
    %c0_i32_0 = arith.constant 0 : i32
    return %arg0, %c0_i32 : i32, i32
  }
}

</mosaic_0001>

<llo_original>
// kernel: tpu_custom_call.1
$region0: #{tpu_custom_call.1}
  #allocation0 [shape = 'u32[]', space=smem, size = 0x4, offset = 0x4, fixed_abs, tag = 'smem constant byte address 0x4 - core index']
  #allocation1 [shape = 'u32[144,128]{1,0:T(1,128)}', space=vmem, size = 0x12000, scoped, tag = 'internal scratch']
  %s0 = inlined_call_operand.hbm [shape: f32[8,128], index: 0, kind: input, shape index: {}]
  %s1 = inlined_call_operand.hbm [shape: f32[128,128], index: 1, kind: input, shape index: {}]
  %s2 = inlined_call_operand.vmem [shape: f32[1,128], index: 2, kind: input, shape index: {}]
  %s3 = inlined_call_operand.hbm [shape: f32[8,128], index: 3, kind: output, shape index: {}]
  %s4 = sld [smem:[#allocation0]]
  $region34: #{tpu_custom_call.1} parent=0
    _
  %s6 = ssub.s32 1, %s4
  %s7 = scalar_select 0, %s6, %s4
  $region1: #{tpu_custom_call.1} parent=0
    #allocation2 [shape = 'u8[4096]{0}', space=vmem, size = 0x1000, scoped, tag = 'input window, operand 0, single buffered']
    #allocation3 [shape = 's32[1]{0}', space=sflag, size = 0x4, scoped, tag = 'scoped memory for tpu_custom_call.1']
    #allocation4 [shape = 's32[1]{0}', space=sflag, size = 0x4, scoped, tag = 'scoped memory for tpu_custom_call.1']
    #allocation5 [shape = 'u8[65536]{0}', space=vmem, size = 0x10000, scoped, tag = 'input window, operand 1, single buffered']
    #allocation6 [shape = 's32[1]{0}', space=sflag, size = 0x4, scoped, tag = 'scoped memory for tpu_custom_call.1']
    #allocation7 [shape = 'u8[4096]{0}', space=vmem, size = 0x1000, scoped, tag = 'output window, operand 0, single buffered']
    %8 = vsyncpa [#allocation3], 0
    %9 = vsyncpa [#allocation6], 0
    %10 = vsyncpa [#allocation4], 0
    // Predicated region
    $region2: #{tpu_custom_call.1} parent=1 // pred_check
      _
    $region3: #{tpu_custom_call.1} parent=1 // pred_check_branch
      %12 = sbr.rel (0) target = $region5
    $region4: #{tpu_custom_call.1} parent=1 // pred_region
      %s13 = sadd.s32 0, 0
      %s15 = ssub.s32 128, 128
      %16 = vsyncadd [#allocation3], %s15
      %s17 = smul.addr %s13, 128
      %s18 = scalar_lea.hbm %s0, %s17
      %s20 = sshll.u32 [#allocation2], 4
      %s21 = int_to_ptr.vmem [resolvable:$true] %s20
      %23 = dma.hbm_to_vmem [thread:$0]  %s18, 128, %s21, [#allocation3]
    $region5: #{tpu_custom_call.1} parent=1 // pred_fallthru
      _
    // Predicated region
    $region6: #{tpu_custom_call.1} parent=1 // pred_check
      _
    $region7: #{tpu_custom_call.1} parent=1 // pred_check_branch
      %25 = sbr.rel (0) target = $region9
    $region8: #{tpu_custom_call.1} parent=1 // pred_region
      %s27 = ssub.s32 2048, 2048
      %28 = vsyncadd [#allocation6], %s27
      %s29 = sshll.u32 [#allocation5], 4
      %s30 = int_to_ptr.vmem [resolvable:$true] %s29
      %35 = dma.hbm_to_vmem [thread:$0]  %s1, 2048, %s30, [#allocation6], 128, 128, 8
    $region9: #{tpu_custom_call.1} parent=1 // pred_fallthru
      _
    // Predicated region
    $region10: #{tpu_custom_call.1} parent=1 // pred_check
      _
    $region11: #{tpu_custom_call.1} parent=1 // pred_check_branch
      %37 = sbr.rel (0) target = $region13
    $region12: #{tpu_custom_call.1} parent=1 // pred_region
      _
    $region13: #{tpu_custom_call.1} parent=1 // pred_fallthru
      _
    // Predicated region
    $region14: #{tpu_custom_call.1} parent=1 // pred_check
      _
    $region15: #{tpu_custom_call.1} parent=1 // pred_check_branch
      %39 = sbr.rel (0) target = $region17
    $region16: #{tpu_custom_call.1} parent=1 // pred_region
      %40 = dma.done [#allocation3], 128
    $region17: #{tpu_custom_call.1} parent=1 // pred_fallthru
      _
    // Predicated region
    $region18: #{tpu_custom_call.1} parent=1 // pred_check
      _
    $region19: #{tpu_custom_call.1} parent=1 // pred_check_branch
      %42 = sbr.rel (0) target = $region21
    $region20: #{tpu_custom_call.1} parent=1 // pred_region
      %43 = dma.done [#allocation6], 2048
    $region21: #{tpu_custom_call.1} parent=1 // pred_fallthru
      _
    %s44 = sadd.s32 0, 0
    %p45 = scmp.eq.s32.totalorder 0, 0
    // Predicated region
    $region22: #{tpu_custom_call.1} parent=1 // pred_check
      %p46 = pneg %p45
    $region23: #{tpu_custom_call.1} parent=1 // pred_check_branch
      %48 = sbr.rel (%p46) target = $region25
    $region24: #{tpu_custom_call.1} parent=1 // pred_region
      %49 = vst [vmem:[#allocation7] sm:$0xff] 0.0
    $region25: #{tpu_custom_call.1} parent=1 // pred_fallthru
      _
    %v50 = vld [vmem:[#allocation2] sm:$0xff]
    %v51 = vld [vmem:[#allocation5] sm:$0xff]
    %v52 = vld [vmem:[#allocation5 + $0x8] sm:$0xff]
    %v53 = vld [vmem:[#allocation5 + $0x10] sm:$0xff]
    %v54 = vld [vmem:[#allocation5 + $0x18] sm:$0xff]
    %v55 = vld [vmem:[#allocation5 + $0x20] sm:$0xff]
    %v56 = vld [vmem:[#allocation5 + $0x28] sm:$0xff]
    %v57 = vld [vmem:[#allocation5 + $0x30] sm:$0xff]
    %v58 = vld [vmem:[#allocation5 + $0x38] sm:$0xff]
    %v59 = vld [vmem:[#allocation5 + $0x40] sm:$0xff]
    %v60 = vld [vmem:[#allocation5 + $0x48] sm:$0xff]
    %v61 = vld [vmem:[#allocation5 + $0x50] sm:$0xff]
    %v62 = vld [vmem:[#allocation5 + $0x58] sm:$0xff]
    %v63 = vld [vmem:[#allocation5 + $0x60] sm:$0xff]
    %v64 = vld [vmem:[#allocation5 + $0x68] sm:$0xff]
    %v65 = vld [vmem:[#allocation5 + $0x70] sm:$0xff]
    %v66 = vld [vmem:[#allocation5 + $0x78] sm:$0xff]
    %67 = vmatprep.subr.mxu0 0.0
    %68 = vmatpush1.msra.mxu0 %v66
    %69 = vmatprep.subr.mxu0 0.0
    %70 = vmatpush1.msra.mxu0 %v65
    %71 = vmatprep.subr.mxu0 0.0
    %72 = vmatpush1.msra.mxu0 %v64
    %73 = vmatprep.subr.mxu0 0.0
    %74 = vmatpush1.msra.mxu0 %v63
    %75 = vmatprep.subr.mxu0 0.0
    %76 = vmatpush1.msra.mxu0 %v62
    %77 = vmatprep.subr.mxu0 0.0
    %78 = vmatpush1.msra.mxu0 %v61
    %79 = vmatprep.subr.mxu0 0.0
    %80 = vmatpush1.msra.mxu0 %v60
    %81 = vmatprep.subr.mxu0 0.0
    %82 = vmatpush1.msra.mxu0 %v59
    %83 = vmatprep.subr.mxu0 0.0
    %84 = vmatpush1.msra.mxu0 %v58
    %85 = vmatprep.subr.mxu0 0.0
    %86 = vmatpush1.msra.mxu0 %v57
    %87 = vmatprep.subr.mxu0 0.0
    %88 = vmatpush1.msra.mxu0 %v56
    %89 = vmatprep.subr.mxu0 0.0
    %90 = vmatpush1.msra.mxu0 %v55
    %91 = vmatprep.subr.mxu0 0.0
    %92 = vmatpush1.msra.mxu0 %v54
    %93 = vmatprep.subr.mxu0 0.0
    %94 = vmatpush1.msra.mxu0 %v53
    %95 = vmatprep.subr.mxu0 0.0
    %96 = vmatpush1.msra.mxu0 %v52
    %97 = vmatprep.subr.mxu0 0.0
    %98 = vmatpush1.msra.mxu0 %v51
    %99 = vmatprep.subr.mxu0 0.0
    %100 = vmatpush2.msra.mxu0 0.0
    %101 = vmatprep.subr.mxu0 0.0
    %102 = vmatpush2.msra.mxu0 0.0
    %103 = vmatprep.subr.mxu0 0.0
    %104 = vmatpush2.msra.mxu0 0.0
    %105 = vmatprep.subr.mxu0 0.0
    %106 = vmatpush2.msra.mxu0 0.0
    %107 = vmatprep.subr.mxu0 0.0
    %108 = vmatpush2.msra.mxu0 0.0
    %109 = vmatprep.subr.mxu0 0.0
    %110 = vmatpush2.msra.mxu0 0.0
    %111 = vmatprep.subr.mxu0 0.0
    %112 = vmatpush2.msra.mxu0 0.0
    %113 = vmatprep.subr.mxu0 0.0
    %114 = vmatpush2.msra.mxu0 0.0
    %115 = vmatprep.subr.mxu0 0.0
    %116 = vmatpush2.msra.mxu0 0.0
    %117 = vmatprep.subr.mxu0 0.0
    %118 = vmatpush2.msra.mxu0 0.0
    %119 = vmatprep.subr.mxu0 0.0
    %120 = vmatpush2.msra.mxu0 0.0
    %121 = vmatprep.subr.mxu0 0.0
    %122 = vmatpush2.msra.mxu0 0.0
    %123 = vmatprep.subr.mxu0 0.0
    %124 = vmatpush2.msra.mxu0 0.0
    %125 = vmatprep.subr.mxu0 0.0
    %126 = vmatpush2.msra.mxu0 0.0
    %127 = vmatprep.subr.mxu0 0.0
    %128 = vmatpush2.msra.mxu0 0.0
    %129 = vmatprep.subr.mxu0 0.0
    %130 = vmatpush2.msra.mxu0 0.0
    %131 = vmatprep.mubr.f32.mxu0 0.0
    %132 = vmatmul.mubr.f32.gmra.mxu0 %v50
    %v133 = vpop.f32.mrf.mxu0
    %v134 = vadd.f32 0.0, %v133
    %v135 = vpop.f32.mrf.mxu0
    %136 = vdwg.mxu0
    %v137 = vld [vmem:[%s2] sm:$0x1]
    %v139 = vlaneseq
    %v140 = vshrl.u32 %v139, 7
    %v141 = vsub.s32 0, %v140
    %v142 = vrot.slane %v137, %v141
    %v144 = vsub.f32 %v134, %v142
    %v145 = vmul.f32 %v144, %v144
    %v146 = vld [vmem:[#allocation7] sm:$0xff]
    %v147 = vadd.f32 %v145, 0.0
    %v148 = vadd.f32 %v146, %v147
    %149 = vst [vmem:[#allocation7] sm:$0xff] %v148
    // Predicated region
    $region26: #{tpu_custom_call.1} parent=1 // pred_check
      _
    $region27: #{tpu_custom_call.1} parent=1 // pred_check_branch
      %151 = sbr.rel (0) target = $region29
    $region28: #{tpu_custom_call.1} parent=1 // pred_region
      %s153 = ssub.s32 128, 128
      %154 = vsyncadd [#allocation4], %s153
      %s156 = sshll.u32 [#allocation7], 4
      %s157 = int_to_ptr.vmem [resolvable:$true] %s156
      %159 = dma.vmem_to_hbm [thread:$0]  %s157, 128, %s3, [#allocation4]
    $region29: #{tpu_custom_call.1} parent=1 // pred_fallthru
      _
    // Predicated region
    $region30: #{tpu_custom_call.1} parent=1 // pred_check
      _
    $region31: #{tpu_custom_call.1} parent=1 // pred_check_branch
      %161 = sbr.rel (0) target = $region33
    $region32: #{tpu_custom_call.1} parent=1 // pred_region
      %162 = dma.done [#allocation4], 128
    $region33: #{tpu_custom_call.1} parent=1 // pred_fallthru
      _
    %163 = vsyncpa [#allocation3], 1
    %164 = vsyncpa [#allocation6], 1
    %165 = vsyncpa [#allocation4], 1

</llo_original>
